<compile_context>
chip_gen: v5e
topology: v5e:2x2
jax: 0.10.0
libtpu: 0.0.40
codegen_flags: <defaults>
</compile_context>

<pallas_src>
import functools

import jax
import jax.numpy as jnp
from jax import lax
from jax.experimental import pallas as pl
from jax.experimental.pallas import tpu as pltpu

EPS = 1e-5


def conv_bn_relu_kernel(p_ref, w_ref, gb_ref, o_ref):
    """Fused conv-as-matmul + train-mode BatchNorm + ReLU.

    p_ref:  (Kdim, M)   patches^T, bf16, lane-dense (M = N*Hout*Wout on the lane dim)
    w_ref:  (C_out, Kdim) conv weights in im2col (c, kh, kw) order, bf16
    gb_ref: (C_out, 2)  column 0 = BN weight (gamma), column 1 = BN bias (beta), f32
    o_ref:  (C_out, M)  f32
    """
    # Convolution as one MXU matmul with bf16 operands and an f32 accumulator.
    conv = jnp.dot(w_ref[...], p_ref[...], preferred_element_type=jnp.float32)  # (C_out, M)

    # BatchNorm2d (training mode): per-channel batch mean & biased variance over the
    # N*Hout*Wout axis, computed from the f32 accumulator and folded into one scale+shift.
    m = conv.shape[1]
    inv_m = 1.0 / m
    s1 = jnp.sum(conv, axis=1, keepdims=True)            # (C_out, 1) lane reduction (XLU)
    s2 = jnp.sum(conv * conv, axis=1, keepdims=True)     # (C_out, 1)
    mean = s1 * inv_m
    var = s2 * inv_m - mean * mean                       # biased variance (PyTorch train BN)

    gamma = gb_ref[:, 0:1]                                # (C_out, 1)
    beta = gb_ref[:, 1:2]                                 # (C_out, 1)
    scale = gamma * lax.rsqrt(var + EPS)                  # rsqrt -> EUP slot
    shift = beta - mean * scale

    # fused scale + shift + ReLU (1 mul + 1 add + 1 max per element, VPU)
    o_ref[...] = jnp.maximum(conv * scale + shift, 0.0).astype(o_ref.dtype)


def conv_layer_forward(x, weight, gamma, beta, *, stride=2, padding=2):
    """x: (N, C_in, H, W) float32 (NCHW). Returns (N, C_out, Hout, Wout) float32.

    Conv2d(C_in->C_out, k=K, stride, padding) [bias cancelled by train-mode BN]
    + BatchNorm2d (train-mode batch statistics) + ReLU.
    """
    N, C_in, H, W = x.shape
    C_out, C_in_w, K, K2 = weight.shape
    assert C_in_w == C_in and K2 == K

    Hout = (H + 2 * padding - K) // stride + 1
    Wout = (W + 2 * padding - K) // stride + 1
    M = N * Hout * Wout
    Kdim = C_in * K * K

    # --- im2col in a single fused XLA launch (identity-kernel convolution). ---
    # Emitted directly in the transposed "CNHW" layout so patches^T (Kdim, M) is a free
    # reshape away (no separate transpose / gather / pad launches on the activation path).
    # Feature ordering of the patch dim is (c, kh, kw) row-major, matching
    # weight.reshape(C_out, C_in*K*K).  bf16 here also halves the patch DMA bytes.
    patches = lax.conv_general_dilated_patches(
        x.astype(jnp.bfloat16),
        filter_shape=(K, K),
        window_strides=(stride, stride),
        padding=((padding, padding), (padding, padding)),
        dimension_numbers=("NCHW", "OIHW", "CNHW"),
    )                                                     # (Kdim, N, Hout, Wout) bf16
    ptT = patches.reshape(Kdim, M)                        # (Kdim, M) lane-dense patches^T

    w2 = weight.reshape(C_out, Kdim).astype(jnp.bfloat16)  # (C_out, Kdim), (c, kh, kw) order
    gb = jnp.stack([gamma, beta], axis=1).astype(jnp.float32)  # (C_out, 2) merged BN params

    cost = pl.CostEstimate(
        flops=int(2 * C_out * Kdim * M + 6 * C_out * M),
        transcendentals=int(C_out),
        bytes_accessed=int(2 * Kdim * M + 2 * C_out * Kdim + 4 * 2 * C_out + 4 * C_out * M),
    )

    # --- Pallas kernel: single whole-array invocation (everything fits in VMEM). ---
    out_t = pl.pallas_call(
        conv_bn_relu_kernel,
        out_shape=jax.ShapeDtypeStruct((C_out, M), jnp.float32),
        in_specs=[pl.BlockSpec(memory_space=pltpu.MemorySpace.VMEM)] * 3,
        out_specs=pl.BlockSpec(memory_space=pltpu.MemorySpace.VMEM),
        cost_estimate=cost,
    )(ptT, w2, gb)

    # lanes are ordered (n, ho, wo) -> back to NCHW (kept for module-equivalent output).
    return out_t.reshape(C_out, N, Hout, Wout).transpose(1, 0, 2, 3)


def reference_forward(x, weight, gamma, beta, *, stride=2, padding=2):
    """Pure-JAX reference with the same bf16 operands / f32 accumulation."""
    conv = lax.conv_general_dilated(
        x.astype(jnp.bfloat16),
        weight.astype(jnp.bfloat16),
        window_strides=(stride, stride),
        padding=((padding, padding), (padding, padding)),
        dimension_numbers=("NCHW", "OIHW", "NCHW"),
        preferred_element_type=jnp.float32,
    )
    mean = jnp.mean(conv, axis=(0, 2, 3), keepdims=True)
    var = jnp.mean((conv - mean) ** 2, axis=(0, 2, 3), keepdims=True)
    y = (conv - mean) * lax.rsqrt(var + EPS)
    y = y * gamma.reshape(1, -1, 1, 1) + beta.reshape(1, -1, 1, 1)
    return jnp.maximum(y, 0.0)


if __name__ == "__main__":
    key = jax.random.PRNGKey(0)
    k_x, k_w = jax.random.split(key, 2)

    # Conv_Cfg = [[1, 32, 5, 2, 2]]
    N, C_in, H, W = 2, 1, 16, 16
    C_out, K = 32, 5

    x = jax.random.normal(k_x, (N, C_in, H, W), dtype=jnp.float32)

    # Deterministic parameter init (mirrors init_params / PyTorch defaults):
    fan_in = C_in * K * K
    kaiming_std = (2.0 / fan_in) ** 0.5                  # kaiming_normal_, nonlinearity='relu'
    weight = kaiming_std * jax.random.normal(k_w, (C_out, C_in, K, K), dtype=jnp.float32)
    # Conv2d bias omitted: train-mode BatchNorm subtracts the per-channel batch mean, so a
    # per-channel additive bias cancels exactly (forward output unchanged).
    gamma = jnp.ones((C_out,), jnp.float32)              # BatchNorm2d default weight
    beta = jnp.zeros((C_out,), jnp.float32)              # BatchNorm2d default bias

    fwd = jax.jit(functools.partial(conv_layer_forward, stride=2, padding=2))
    out = jax.block_until_ready(fwd(x, weight, gamma, beta))

    assert out.shape == (N, C_out, 8, 8), out.shape
    assert bool(jnp.all(out >= 0.0))                     # ReLU post-condition

    ref = reference_forward(x, weight, gamma, beta, stride=2, padding=2)
    max_err = float(jnp.max(jnp.abs(out - ref)))
    assert jnp.allclose(out, ref, atol=5e-3, rtol=5e-3), max_err

    print("KERNEL_OK")
</pallas_src>

<mosaic_0001>
module attributes {stable_mosaic.version = 11 : i64} {
  func.func @conv_bn_relu_kernel(%arg0: memref<25x128xbf16, #tpu.memory_space<vmem>>, %arg1: memref<32x25xbf16, #tpu.memory_space<vmem>>, %arg2: memref<32x2xf32, #tpu.memory_space<vmem>>, %arg3: memref<32x128xf32, #tpu.memory_space<vmem>>) attributes {dimension_semantics = [], scalar_prefetch = 0 : i64, scratch_operands = 0 : i64, tpu.core_type = #tpu.core_type<tc>} {
    %c0 = arith.constant 0 : index
    %c0_0 = arith.constant 0 : index
    %0 = vector.load %arg1[%c0, %c0_0] : memref<32x25xbf16, #tpu.memory_space<vmem>>, vector<32x25xbf16>
    %c0_1 = arith.constant 0 : index
    %c0_2 = arith.constant 0 : index
    %1 = vector.load %arg0[%c0_1, %c0_2] : memref<25x128xbf16, #tpu.memory_space<vmem>>, vector<25x128xbf16>
    %cst = arith.constant dense<0.000000e+00> : vector<32x128xf32>
    %2 = tpu.matmul %0, %1, %cst {dimension_numbers = #tpu.dot_dimension_numbers<[1], [0], [0], [1], [0, 0, 1, 1], [], []>} : vector<32x25xbf16>, vector<25x128xbf16>, vector<32x128xf32> -> vector<32x128xf32>
    %cst_3 = arith.constant dense<0.000000e+00> : vector<32xf32>
    %3 = vector.multi_reduction <add>, %2, %cst_3 [1] : vector<32x128xf32> to vector<32xf32>
    %4 = vector.shape_cast %3 : vector<32xf32> to vector<32x1xf32>
    %5 = arith.mulf %2, %2 : vector<32x128xf32>
    %cst_4 = arith.constant dense<0.000000e+00> : vector<32xf32>
    %6 = vector.multi_reduction <add>, %5, %cst_4 [1] : vector<32x128xf32> to vector<32xf32>
    %7 = vector.shape_cast %6 : vector<32xf32> to vector<32x1xf32>
    %cst_5 = arith.constant 7.812500e-03 : f32
    %8 = vector.broadcast %cst_5 : f32 to vector<32x1xf32>
    %9 = arith.mulf %4, %8 : vector<32x1xf32>
    %cst_6 = arith.constant 7.812500e-03 : f32
    %10 = vector.broadcast %cst_6 : f32 to vector<32x1xf32>
    %11 = arith.mulf %7, %10 : vector<32x1xf32>
    %12 = arith.mulf %9, %9 : vector<32x1xf32>
    %13 = arith.subf %11, %12 : vector<32x1xf32>
    %c0_7 = arith.constant 0 : index
    %c0_8 = arith.constant 0 : index
    %14 = vector.load %arg2[%c0_7, %c0_8] : memref<32x2xf32, #tpu.memory_space<vmem>>, vector<32x1xf32>
    %c0_9 = arith.constant 0 : index
    %c1 = arith.constant 1 : index
    %15 = vector.load %arg2[%c0_9, %c1] : memref<32x2xf32, #tpu.memory_space<vmem>>, vector<32x1xf32>
    %cst_10 = arith.constant 9.99999974E-6 : f32
    %16 = vector.broadcast %cst_10 : f32 to vector<32x1xf32>
    %17 = arith.addf %13, %16 : vector<32x1xf32>
    %18 = math.rsqrt %17 : vector<32x1xf32>
    %19 = arith.mulf %14, %18 : vector<32x1xf32>
    %20 = arith.mulf %9, %19 : vector<32x1xf32>
    %21 = arith.subf %15, %20 : vector<32x1xf32>
    %22 = vector.broadcast %19 : vector<32x1xf32> to vector<32x128xf32>
    %23 = arith.mulf %2, %22 : vector<32x128xf32>
    %24 = vector.broadcast %21 : vector<32x1xf32> to vector<32x128xf32>
    %25 = arith.addf %23, %24 : vector<32x128xf32>
    %cst_11 = arith.constant 0.000000e+00 : f32
    %26 = vector.broadcast %cst_11 : f32 to vector<32x128xf32>
    %27 = arith.maximumf %25, %26 : vector<32x128xf32>
    %c0_12 = arith.constant 0 : index
    %c0_13 = arith.constant 0 : index
    %28 = vector.load %arg3[%c0_12, %c0_13] : memref<32x128xf32, #tpu.memory_space<vmem>>, vector<32x128xf32>
    tpu.vector_store %arg3[%c0_12, %c0_13], %27 {strides = array<i32>} : memref<32x128xf32, #tpu.memory_space<vmem>>, vector<32x128xf32>,
    return
  }
}

</mosaic_0001>

<llo_original>
// kernel: conv_layer_forward.1
$region0: #{conv_layer_forward.1}
  #allocation0 [shape = 'u32[]', space=smem, size = 0x4, offset = 0x4, fixed_abs, tag = 'smem constant byte address 0x4 - core index']
  #allocation1 [shape = 'u32[72,128]{1,0:T(1,128)}', space=vmem, size = 0x9000, scoped, tag = 'internal scratch']
  %s0 = inlined_call_operand.vmem [shape: bf16[25,128], index: 0, kind: input, shape index: {}]
  %s1 = inlined_call_operand.vmem [shape: bf16[32,25], index: 1, kind: input, shape index: {}]
  %s2 = inlined_call_operand.vmem [shape: f32[32,2], index: 2, kind: input, shape index: {}]
  %s3 = inlined_call_operand.vmem [shape: f32[32,128], index: 3, kind: output, shape index: {}]
  %s4 = sld [smem:[#allocation0]]
  $region22: #{conv_layer_forward.1} parent=0
    _
  %s6 = ssub.s32 1, %s4
  %s7 = scalar_select 0, %s6, %s4
  // Predicated region
  $region2: #{conv_layer_forward.1} parent=0 // pred_check
    _
  $region3: #{conv_layer_forward.1} parent=0 // pred_check_branch
    %9 = sbr.rel (0) target = $region5
  $region4: #{conv_layer_forward.1} parent=0 // pred_region
    _
  $region5: #{conv_layer_forward.1} parent=0 // pred_fallthru
    _
  // Predicated region
  $region6: #{conv_layer_forward.1} parent=0 // pred_check
    _
  $region7: #{conv_layer_forward.1} parent=0 // pred_check_branch
    %11 = sbr.rel (0) target = $region9
  $region8: #{conv_layer_forward.1} parent=0 // pred_region
    _
  $region9: #{conv_layer_forward.1} parent=0 // pred_fallthru
    _
  // Predicated region
  $region10: #{conv_layer_forward.1} parent=0 // pred_check
    _
  $region11: #{conv_layer_forward.1} parent=0 // pred_check_branch
    %13 = sbr.rel (0) target = $region13
  $region12: #{conv_layer_forward.1} parent=0 // pred_region
    _
  $region13: #{conv_layer_forward.1} parent=0 // pred_fallthru
    _
  %v15 = vld [vmem:[%s1] sm:$0xf]
  %v16 = vld [vmem:[%s1 + $0x4] sm:$0xf]
  %v17 = vld [vmem:[%s1 + $0x8] sm:$0xf]
  %v18 = vld [vmem:[%s1 + $0xc] sm:$0xf]
  %v19 = vld [vmem:[%s0] sm:$0xf]
  %v20 = vld [vmem:[%s0 + $0x4] sm:$0xf]
  %v21 = vld [vmem:[%s0 + $0x8] sm:$0xf]
  %v22 = vld [vmem:[%s0 + $0xc] sm:$0x1]
  %v27 = vunpack.c.l.b16 %v15
  %v28 = vunpack.c.l.b16 %v16
  %v29 = vunpack.c.l.b16 %v17
  %v30 = vunpack.c.l.b16 %v18
  %v31 = vpack.c.b16 %v28, %v27
  %v32 = vpack.c.b16 %v30, %v29
  %v37 = vunpack.c.l.b16 %v19
  %v38 = vunpack.c.l.b16 %v20
  %v39 = vunpack.c.l.b16 %v21
  %v40 = vunpack.c.l.b16 %v22
  %v41 = vpack.c.b16 %v38, %v37
  %v42 = vpack.c.b16 %v40, %v39
  %vm44 = vcmask 203776
  %v46 = vsel %vm44, %v31, 0
  %v49 = vsel %vm44, %v32, 0
  %vm51 = vcmask 1043456
  %vm52 = vcmask 1044480
  %v53 = vsel %vm51, 4294967295, 65535
  %v54 = vsel %vm52, %v53, 0
  %v56 = vand.u32 %v42, %v54
  %58 = vmatpush.bf16.msra.mxu0 0
  %59 = vmatpush.bf16.msra.mxu0 0
  %60 = vmatpush.bf16.msra.mxu0 0
  %61 = vmatpush.bf16.msra.mxu0 0
  %62 = vmatpush.bf16.msra.mxu0 0
  %63 = vmatpush.bf16.msra.mxu0 0
  %64 = vmatpush.bf16.msra.mxu0 %v56
  %65 = vmatpush.bf16.msra.mxu0 %v41
  %66 = vmatmul.bf16.gmra.mxu0 %v46
  %v67 = vpop.f32.mrf.mxu0
  %v68 = vadd.f32 0.0, %v67
  %v69 = vpop.f32.mrf.mxu0
  %v70 = vadd.f32 0.0, %v69
  %71 = vmatmul.bf16.gmra.mxu0 %v49
  %v72 = vpop.f32.mrf.mxu0
  %v73 = vadd.f32 0.0, %v72
  %v74 = vpop.f32.mrf.mxu0
  %v75 = vadd.f32 0.0, %v74
  %76 = vdwg.mxu0
  %77 = vadd.xlane.f32.xlu0 %v68
  %v78 = vpop.xlane.xlu0 %77
  %79 = vadd.xlane.f32.xlu0 %v70
  %v80 = vpop.xlane.xlu0 %79
  %81 = vadd.xlane.f32.xlu0 %v73
  %v82 = vpop.xlane.xlu0 %81
  %83 = vadd.xlane.f32.xlu0 %v75
  %v84 = vpop.xlane.xlu0 %83
  %v85 = vmul.f32 %v68, %v68
  %v86 = vmul.f32 %v70, %v70
  %v87 = vmul.f32 %v73, %v73
  %v88 = vmul.f32 %v75, %v75
  %89 = vadd.xlane.f32.xlu0 %v85
  %v90 = vpop.xlane.xlu0 %89
  %91 = vadd.xlane.f32.xlu0 %v86
  %v92 = vpop.xlane.xlu0 %91
  %93 = vadd.xlane.f32.xlu0 %v87
  %v94 = vpop.xlane.xlu0 %93
  %95 = vadd.xlane.f32.xlu0 %v88
  %v96 = vpop.xlane.xlu0 %95
  %v97 = vmul.f32 %v78, 0.0078125
  %v98 = vmul.f32 %v80, 0.0078125
  %v99 = vmul.f32 %v82, 0.0078125
  %v100 = vmul.f32 %v84, 0.0078125
  %v101 = vmul.f32 %v90, 0.0078125
  %v102 = vmul.f32 %v92, 0.0078125
  %v103 = vmul.f32 %v94, 0.0078125
  %v104 = vmul.f32 %v96, 0.0078125
  %v105 = vmul.f32 %v97, %v97
  %v106 = vmul.f32 %v98, %v98
  %v107 = vmul.f32 %v99, %v99
  %v108 = vmul.f32 %v100, %v100
  %v109 = vsub.f32 %v101, %v105
  %v110 = vsub.f32 %v102, %v106
  %v111 = vsub.f32 %v103, %v107
  %v112 = vsub.f32 %v104, %v108
  %v113 = vld [vmem:[%s2] sm:$0xff]
  %v114 = vld [vmem:[%s2 + $0x8] sm:$0xff]
  %v115 = vld [vmem:[%s2 + $0x10] sm:$0xff]
  %v116 = vld [vmem:[%s2 + $0x18] sm:$0xff]
  %v117 = vadd.f32 %v109, 1e-05
  %v118 = vadd.f32 %v110, 1e-05
  %v119 = vadd.f32 %v111, 1e-05
  %v120 = vadd.f32 %v112, 1e-05
  %v121 = vrsqrt.pop %v117
  %v122 = vmul.f32 %v121, %v117
  %v123 = vmul.f32 %v122, %v121
  %v124 = vmul.f32 0.5, %v123
  %v125 = vsub.f32 1.5, %v124
  %v126 = vmul.f32 %v121, %v125
  %vm127 = vweird.f32 %v117
  %vm128 = vweird.f32 %v121
  %vm129 = vmor %vm127, %vm128
  %v130 = vsel %vm129, %v121, %v126
  %v131 = vrsqrt.pop %v118
  %v132 = vmul.f32 %v131, %v118
  %v133 = vmul.f32 %v132, %v131
  %v134 = vmul.f32 0.5, %v133
  %v135 = vsub.f32 1.5, %v134
  %v136 = vmul.f32 %v131, %v135
  %vm137 = vweird.f32 %v118
  %vm138 = vweird.f32 %v131
  %vm139 = vmor %vm137, %vm138
  %v140 = vsel %vm139, %v131, %v136
  %v141 = vrsqrt.pop %v119
  %v142 = vmul.f32 %v141, %v119
  %v143 = vmul.f32 %v142, %v141
  %v144 = vmul.f32 0.5, %v143
  %v145 = vsub.f32 1.5, %v144
  %v146 = vmul.f32 %v141, %v145
  %vm147 = vweird.f32 %v119
  %vm148 = vweird.f32 %v141
  %vm149 = vmor %vm147, %vm148
  %v150 = vsel %vm149, %v141, %v146
  %v151 = vrsqrt.pop %v120
  %v152 = vmul.f32 %v151, %v120
  %v153 = vmul.f32 %v152, %v151
  %v154 = vmul.f32 0.5, %v153
  %v155 = vsub.f32 1.5, %v154
  %v156 = vmul.f32 %v151, %v155
  %vm157 = vweird.f32 %v120
  %vm158 = vweird.f32 %v151
  %vm159 = vmor %vm157, %vm158
  %v160 = vsel %vm159, %v151, %v156
  %v161 = vmul.f32 %v113, %v130
  %v162 = vmul.f32 %v114, %v140
  %v163 = vmul.f32 %v115, %v150
  %v164 = vmul.f32 %v116, %v160
  %v165 = vmul.f32 %v97, %v161
  %v166 = vmul.f32 %v98, %v162
  %v167 = vmul.f32 %v99, %v163
  %v168 = vmul.f32 %v100, %v164
  %173 = vrot.lane.b32.xlu0 %v165, 1
  %v174 = vpop.permute.xlu0 %173
  %175 = vrot.lane.b32.xlu0 %v166, 1
  %v176 = vpop.permute.xlu0 %175
  %177 = vrot.lane.b32.xlu0 %v167, 1
  %v178 = vpop.permute.xlu0 %177
  %179 = vrot.lane.b32.xlu0 %v168, 1
  %v180 = vpop.permute.xlu0 %179
  %v185 = vsub.f32 %v113, %v174
  %v186 = vsub.f32 %v114, %v176
  %v187 = vsub.f32 %v115, %v178
  %v188 = vsub.f32 %v116, %v180
  %190 = vset.pattern.permute.xlu0 0
  %191 = vperm.xlu0 %190, %v161
  %v192 = vpop.permute.xlu0 %191
  %195 = vset.pattern.permute.xlu0 0
  %196 = vperm.xlu0 %195, %v162
  %v197 = vpop.permute.xlu0 %196
  %200 = vset.pattern.permute.xlu0 0
  %201 = vperm.xlu0 %200, %v163
  %v202 = vpop.permute.xlu0 %201
  %205 = vset.pattern.permute.xlu0 0
  %206 = vperm.xlu0 %205, %v164
  %v207 = vpop.permute.xlu0 %206
  %v209 = vmul.f32 %v68, %v192
  %v210 = vmul.f32 %v70, %v197
  %v211 = vmul.f32 %v73, %v202
  %v212 = vmul.f32 %v75, %v207
  %214 = vset.pattern.permute.xlu0 1
  %215 = vperm.xlu0 %214, %v185
  %v216 = vpop.permute.xlu0 %215
  %219 = vset.pattern.permute.xlu0 1
  %220 = vperm.xlu0 %219, %v186
  %v221 = vpop.permute.xlu0 %220
  %224 = vset.pattern.permute.xlu0 1
  %225 = vperm.xlu0 %224, %v187
  %v226 = vpop.permute.xlu0 %225
  %229 = vset.pattern.permute.xlu0 1
  %230 = vperm.xlu0 %229, %v188
  %v231 = vpop.permute.xlu0 %230
  %v233 = vadd.f32 %v209, %v216
  %v234 = vadd.f32 %v210, %v221
  %v235 = vadd.f32 %v211, %v226
  %v236 = vadd.f32 %v212, %v231
  %v237 = vmax.f32 %v233, 0.0
  %v238 = vmax.f32 %v234, 0.0
  %v239 = vmax.f32 %v235, 0.0
  %v240 = vmax.f32 %v236, 0.0
  %241 = vst [vmem:[%s3] sm:$0xff] %v237
  %242 = vst [vmem:[%s3 + $0x8] sm:$0xff] %v238
  %243 = vst [vmem:[%s3 + $0x10] sm:$0xff] %v239
  %244 = vst [vmem:[%s3 + $0x18] sm:$0xff] %v240
  // Predicated region
  $region14: #{conv_layer_forward.1} parent=0 // pred_check
    _
  $region15: #{conv_layer_forward.1} parent=0 // pred_check_branch
    %246 = sbr.rel (0) target = $region17
  $region16: #{conv_layer_forward.1} parent=0 // pred_region
    _
  $region17: #{conv_layer_forward.1} parent=0 // pred_fallthru
    _
  // Predicated region
  $region18: #{conv_layer_forward.1} parent=0 // pred_check
    _
  $region19: #{conv_layer_forward.1} parent=0 // pred_check_branch
    %248 = sbr.rel (0) target = $region21
  $region20: #{conv_layer_forward.1} parent=0 // pred_region
    _
  $region21: #{conv_layer_forward.1} parent=0 // pred_fallthru
    _

</llo_original>
